<compile_context>
chip_gen: v7x
topology: tpu7x:2x2x1
jax: 0.10.0
libtpu: 0.0.40
codegen_flags: <defaults>
</compile_context>

<pallas_src>
import jax
import jax.numpy as jnp
from jax import lax
from jax.experimental import pallas as pl
from jax.experimental.pallas import tpu as pltpu  # noqa: F401  (TPU backend)

# ----------------------------- config (module defaults, small) ---------------
B = 2                  # batch
NUM_VOXELS = 224       # K
PATCH = 16             # patch_size
IN_CHANS = 1           # C
EMBED_DIM = 768        # embed_dim
NP = NUM_VOXELS // PATCH          # num_patches = 14
CP = IN_CHANS * PATCH             # flattened patch length = 16
M = B * NP                        # 28 rows (batch folded into sublanes)
assert EMBED_DIM % 128 == 0       # lane-dense output


# ----------------------------- kernel ----------------------------------------
def patch_embed_kernel(x_ref, w_ref, b_ref, o_ref):
    # x_ref: (M, CP)  w_ref: (CP, ED)  b_ref: (1, ED)  o_ref: (M, ED)
    o_ref[...] = (
        jnp.dot(x_ref[...], w_ref[...], preferred_element_type=jnp.float32)
        + b_ref[...]
    ).astype(o_ref.dtype)


# ----------------------------- param prep (done ONCE, not per forward) --------
def prepare_params(weight, bias):
    """weight: (ED, C, P) Conv1d layout; bias: (ED,).
    Returns (wf, bf) pre-flattened for the kernel: (CP, ED), (1, ED)."""
    wf = weight.reshape(EMBED_DIM, CP).T          # (CP, ED) -- (c, t) tap order
    bf = bias.reshape(1, EMBED_DIM)               # (1, ED)
    return wf, bf


# ----------------------------- forward wrapper (jitted, fully fused) ----------
@jax.jit
def patch_embed_1d(x, wf, bf):
    """x: (B, C, K) f32; wf: (CP, ED); bf: (1, ED). Returns (B, NP, ED),
    matching PyTorch's proj(x).transpose(1, 2)."""
    Bx, C, K = x.shape
    assert (Bx, C, K) == (B, IN_CHANS, NUM_VOXELS)

    # Non-overlapping patches, flattened in (channel, tap) order so they line
    # up with Conv1d weight[e, c, t].
    xp = x.reshape(B, C, NP, PATCH).transpose(0, 2, 1, 3).reshape(M, CP)

    out = pl.pallas_call(
        patch_embed_kernel,
        out_shape=jax.ShapeDtypeStruct((M, EMBED_DIM), jnp.float32),
        in_specs=[
            pl.BlockSpec((M, CP), lambda: (0, 0)),            # activations (whole)
            pl.BlockSpec((CP, EMBED_DIM), lambda: (0, 0)),    # weight (whole)
            pl.BlockSpec((1, EMBED_DIM), lambda: (0, 0)),     # bias (whole)
        ],
        out_specs=pl.BlockSpec((M, EMBED_DIM), lambda: (0, 0)),
    )(xp, wf, bf)

    return out.reshape(B, NP, EMBED_DIM)


# ----------------------------- reference (plain JAX conv) ---------------------
def patch_embed_1d_ref(x, weight, bias):
    y = lax.conv_general_dilated(
        x, weight, window_strides=(PATCH,), padding="VALID",
        dimension_numbers=("NCH", "OIH", "NCH"),
    )                                                         # (B, ED, NP)
    return jnp.transpose(y, (0, 2, 1)) + bias[None, None, :]  # (B, NP, ED)


# ----------------------------- main -------------------------------------------
if __name__ == "__main__":
    key = jax.random.PRNGKey(0)
    kx, kw, kb = jax.random.split(key, 3)

    x = jax.random.normal(kx, (B, IN_CHANS, NUM_VOXELS), jnp.float32)
    # Conv1d-style parameter shapes (PyTorch layout: [out_ch, in_ch, kernel])
    weight = jax.random.normal(kw, (EMBED_DIM, IN_CHANS, PATCH), jnp.float32) * 0.02
    bias = jax.random.normal(kb, (EMBED_DIM,), jnp.float32) * 0.02

    # Parameter flatten/transpose happens once here (load time), not per call.
    wf, bf = prepare_params(weight, bias)

    out = patch_embed_1d(x, wf, bf)
    out = jax.block_until_ready(out)

    assert out.shape == (B, NP, EMBED_DIM), out.shape
    assert bool(jnp.all(jnp.isfinite(out)))

    ref = patch_embed_1d_ref(x, weight, bias)
    assert bool(jnp.allclose(out, ref, rtol=1e-4, atol=1e-4))

    print("KERNEL_OK")
</pallas_src>

<mosaic_0001>
module attributes {stable_mosaic.version = 11 : i64} {
  func.func @patch_embed_kernel(%arg0: memref<28x16xf32, #tpu.memory_space<vmem>>, %arg1: memref<16x768xf32, #tpu.memory_space<vmem>>, %arg2: memref<1x768xf32, #tpu.memory_space<vmem>>, %arg3: memref<28x768xf32, #tpu.memory_space<vmem>>) attributes {dimension_semantics = [], scalar_prefetch = 0 : i64, scratch_operands = 0 : i64, tpu.core_type = #tpu.core_type<tc>} {
    %c0 = arith.constant 0 : index
    %c0_0 = arith.constant 0 : index
    %0 = vector.load %arg0[%c0, %c0_0] : memref<28x16xf32, #tpu.memory_space<vmem>>, vector<28x16xf32>
    %c0_1 = arith.constant 0 : index
    %c0_2 = arith.constant 0 : index
    %1 = vector.load %arg1[%c0_1, %c0_2] : memref<16x768xf32, #tpu.memory_space<vmem>>, vector<16x768xf32>
    %cst = arith.constant dense<0.000000e+00> : vector<28x768xf32>
    %2 = tpu.matmul %0, %1, %cst {dimension_numbers = #tpu.dot_dimension_numbers<[1], [0], [0], [1], [0, 0, 1, 1], [], []>} : vector<28x16xf32>, vector<16x768xf32>, vector<28x768xf32> -> vector<28x768xf32>
    %c0_3 = arith.constant 0 : index
    %c0_4 = arith.constant 0 : index
    %3 = vector.load %arg2[%c0_3, %c0_4] : memref<1x768xf32, #tpu.memory_space<vmem>>, vector<1x768xf32>
    %4 = vector.broadcast %3 : vector<1x768xf32> to vector<28x768xf32>
    %5 = arith.addf %2, %4 : vector<28x768xf32>
    %c0_5 = arith.constant 0 : index
    %c0_6 = arith.constant 0 : index
    %6 = vector.load %arg3[%c0_5, %c0_6] : memref<28x768xf32, #tpu.memory_space<vmem>>, vector<28x768xf32>
    tpu.vector_store %arg3[%c0_5, %c0_6], %5 {strides = array<i32>} : memref<28x768xf32, #tpu.memory_space<vmem>>, vector<28x768xf32>,
    return
  }
}

</mosaic_0001>

<llo_original>
// kernel: patch_embed_1d.1
$region0: #{patch_embed_1d.1}
  #allocation0 [shape = 'u32[]', space=smem, size = 0x4, offset = 0x4, fixed_abs, tag = 'smem constant byte address 0x4 - core index']
  #allocation1 [shape = 'u32[144,128]{1,0:T(1,128)}', space=vmem, size = 0x12000, scoped, tag = 'internal scratch']
  %s0 = inlined_call_operand.vmem [shape: f32[28,16], index: 0, kind: input, shape index: {}]
  %s1 = inlined_call_operand.hbm [shape: f32[16,768], index: 1, kind: input, shape index: {}]
  %s2 = inlined_call_operand.vmem [shape: f32[1,768], index: 2, kind: input, shape index: {}]
  %s3 = inlined_call_operand.vmem [shape: f32[28,768], index: 3, kind: output, shape index: {}]
  %s4 = sld [smem:[#allocation0]]
  $region26: #{patch_embed_1d.1} parent=0
    _
  %s6 = ssub.s32 1, %s4
  %s7 = scalar_select 0, %s6, %s4
  $region1: #{patch_embed_1d.1} parent=0
    #allocation2 [shape = 'u8[49152]{0}', space=vmem, size = 0xc000, scoped, tag = 'input window, operand 1, single buffered']
    #allocation3 [shape = 's32[1]{0}', space=sflag, size = 0x4, scoped, tag = 'scoped memory for patch_embed_1d.1']
    %8 = vsyncpa [#allocation3], 0
    // Predicated region
    $region2: #{patch_embed_1d.1} parent=1 // pred_check
      _
    $region3: #{patch_embed_1d.1} parent=1 // pred_check_branch
      %10 = sbr.rel (0) target = $region5
    $region4: #{patch_embed_1d.1} parent=1 // pred_region
      _
    $region5: #{patch_embed_1d.1} parent=1 // pred_fallthru
      _
    // Predicated region
    $region6: #{patch_embed_1d.1} parent=1 // pred_check
      _
    $region7: #{patch_embed_1d.1} parent=1 // pred_check_branch
      %12 = sbr.rel (0) target = $region9
    $region8: #{patch_embed_1d.1} parent=1 // pred_region
      %s14 = ssub.s32 1536, 1536
      %15 = vsyncadd [#allocation3], %s14
      %s16 = sshll.u32 [#allocation2], 4
      %s17 = int_to_ptr.vmem [resolvable:$true] %s16
      %22 = dma.hbm_to_vmem [thread:$0]  %s1, 1536, %s17, [#allocation3], 768, 768, 48
    $region9: #{patch_embed_1d.1} parent=1 // pred_fallthru
      _
    // Predicated region
    $region10: #{patch_embed_1d.1} parent=1 // pred_check
      _
    $region11: #{patch_embed_1d.1} parent=1 // pred_check_branch
      %24 = sbr.rel (0) target = $region13
    $region12: #{patch_embed_1d.1} parent=1 // pred_region
      _
    $region13: #{patch_embed_1d.1} parent=1 // pred_fallthru
      _
    // Predicated region
    $region14: #{patch_embed_1d.1} parent=1 // pred_check
      _
    $region15: #{patch_embed_1d.1} parent=1 // pred_check_branch
      %26 = sbr.rel (0) target = $region17
    $region16: #{patch_embed_1d.1} parent=1 // pred_region
      %27 = dma.done [#allocation3], 1536
    $region17: #{patch_embed_1d.1} parent=1 // pred_fallthru
      _
    %v28 = vld [vmem:[%s0] sm:$0xff]
    %v29 = vld [vmem:[%s0 + $0x8] sm:$0xff]
    %v30 = vld [vmem:[%s0 + $0x10] sm:$0xff]
    %v31 = vld [vmem:[%s0 + $0x18] sm:$0xf]
    %v32 = vld [vmem:[#allocation2] sm:$0xff]
    %v33 = vld [vmem:[#allocation2 + $0x8] sm:$0xff]
    %v34 = vld [vmem:[#allocation2 + $0x10] sm:$0xff]
    %v35 = vld [vmem:[#allocation2 + $0x18] sm:$0xff]
    %v36 = vld [vmem:[#allocation2 + $0x20] sm:$0xff]
    %v37 = vld [vmem:[#allocation2 + $0x28] sm:$0xff]
    %v38 = vld [vmem:[#allocation2 + $0x30] sm:$0xff]
    %v39 = vld [vmem:[#allocation2 + $0x38] sm:$0xff]
    %v40 = vld [vmem:[#allocation2 + $0x40] sm:$0xff]
    %v41 = vld [vmem:[#allocation2 + $0x48] sm:$0xff]
    %v42 = vld [vmem:[#allocation2 + $0x50] sm:$0xff]
    %v43 = vld [vmem:[#allocation2 + $0x58] sm:$0xff]
    %v44 = vld [vmem:[%s2] sm:$0x3f]
    %v46 = vlaneseq
    %v47 = vshrl.u32 %v46, 7
    %v48 = vsub.s32 0, %v47
    %v49 = vrot.slane %v44, %v48
    %v50 = vlaneseq
    %v51 = vshrl.u32 %v50, 7
    %v52 = vsub.s32 1, %v51
    %v53 = vrot.slane %v44, %v52
    %v54 = vlaneseq
    %v55 = vshrl.u32 %v54, 7
    %v56 = vsub.s32 2, %v55
    %v57 = vrot.slane %v44, %v56
    %v58 = vlaneseq
    %v59 = vshrl.u32 %v58, 7
    %v60 = vsub.s32 3, %v59
    %v61 = vrot.slane %v44, %v60
    %v62 = vlaneseq
    %v63 = vshrl.u32 %v62, 7
    %v64 = vsub.s32 4, %v63
    %v65 = vrot.slane %v44, %v64
    %v66 = vlaneseq
    %v67 = vshrl.u32 %v66, 7
    %v68 = vsub.s32 5, %v67
    %v69 = vrot.slane %v44, %v68
    %vm76 = vcmask 130048
    %v78 = vsel %vm76, %v28, 0
    %v81 = vsel %vm76, %v29, 0
    %v84 = vsel %vm76, %v30, 0
    %v87 = vsel %vm76, %v31, 0
    %89 = vmatprep.subr.mxu0 %v33
    %90 = vmatpush1.msra.mxu0 %v32
    %91 = vmatprep.subr.mxu0 %v39
    %92 = vmatpush1.msra.mxu0 %v38
    %93 = vmatprep.subr.mxu0 0.0
    %94 = vmatpush1.msra.mxu0 0.0
    %95 = vmatprep.subr.mxu0 0.0
    %96 = vmatpush1.msra.mxu0 0.0
    %97 = vmatprep.subr.mxu0 0.0
    %98 = vmatpush1.msra.mxu0 0.0
    %99 = vmatprep.subr.mxu0 0.0
    %100 = vmatpush1.msra.mxu0 0.0
    %101 = vmatprep.subr.mxu0 0.0
    %102 = vmatpush1.msra.mxu0 0.0
    %103 = vmatprep.subr.mxu0 0.0
    %104 = vmatpush1.msra.mxu0 0.0
    %105 = vmatprep.subr.mxu0 0.0
    %106 = vmatpush1.msra.mxu0 0.0
    %107 = vmatprep.subr.mxu0 0.0
    %108 = vmatpush1.msra.mxu0 0.0
    %109 = vmatprep.subr.mxu0 0.0
    %110 = vmatpush1.msra.mxu0 0.0
    %111 = vmatprep.subr.mxu0 0.0
    %112 = vmatpush1.msra.mxu0 0.0
    %113 = vmatprep.subr.mxu0 0.0
    %114 = vmatpush1.msra.mxu0 0.0
    %115 = vmatprep.subr.mxu0 0.0
    %116 = vmatpush1.msra.mxu0 0.0
    %117 = vmatprep.subr.mxu0 0.0
    %118 = vmatpush1.msra.mxu0 0.0
    %119 = vmatprep.subr.mxu0 0.0
    %120 = vmatpush1.msra.mxu0 0.0
    %121 = vmatprep.subr.mxu0 0.0
    %122 = vmatpush1.msra.mxu0 0.0
    %123 = vmatprep.subr.mxu0 0.0
    %124 = vmatpush1.msra.mxu0 0.0
    %125 = vmatprep.subr.mxu0 0.0
    %126 = vmatpush1.msra.mxu0 0.0
    %127 = vmatprep.subr.mxu0 0.0
    %128 = vmatpush1.msra.mxu0 0.0
    %129 = vmatprep.subr.mxu0 0.0
    %130 = vmatpush1.msra.mxu0 0.0
    %131 = vmatprep.subr.mxu0 0.0
    %132 = vmatpush1.msra.mxu0 0.0
    %133 = vmatprep.subr.mxu0 0.0
    %134 = vmatpush1.msra.mxu0 0.0
    %135 = vmatprep.subr.mxu0 0.0
    %136 = vmatpush1.msra.mxu0 0.0
    %137 = vmatprep.subr.mxu0 0.0
    %138 = vmatpush1.msra.mxu0 0.0
    %139 = vmatprep.subr.mxu0 0.0
    %140 = vmatpush1.msra.mxu0 0.0
    %141 = vmatprep.subr.mxu0 0.0
    %142 = vmatpush1.msra.mxu0 0.0
    %143 = vmatprep.subr.mxu0 0.0
    %144 = vmatpush1.msra.mxu0 0.0
    %145 = vmatprep.subr.mxu0 0.0
    %146 = vmatpush1.msra.mxu0 0.0
    %147 = vmatprep.subr.mxu0 0.0
    %148 = vmatpush1.msra.mxu0 0.0
    %149 = vmatprep.subr.mxu0 0.0
    %150 = vmatpush1.msra.mxu0 0.0
    %151 = vmatprep.subr.mxu0 0.0
    %152 = vmatpush1.msra.mxu0 0.0
    %153 = vmatprep.mubr.f32.mxu0 0.0
    %154 = vmatmul.mubr.f32.gmra.mrb[0].mxu0 %v78
    %v155 = vpop.f32.mrb[0].mxu0
    %v156 = vadd.f32 %v49, %v155
    %v157 = vpop.f32.mrb[0].mxu0
    %v158 = vadd.f32 %v53, %v157
    %159 = vmatprep.mubr.f32.mxu0 0.0
    %160 = vmatmul.mubr.f32.gmra.mrb[0].mxu0 %v81
    %v161 = vpop.f32.mrb[0].mxu0
    %v162 = vadd.f32 %v49, %v161
    %v163 = vpop.f32.mrb[0].mxu0
    %v164 = vadd.f32 %v53, %v163
    %165 = vmatprep.mubr.f32.mxu0 0.0
    %166 = vmatmul.mubr.f32.gmra.mrb[0].mxu0 %v84
    %v167 = vpop.f32.mrb[0].mxu0
    %v168 = vadd.f32 %v49, %v167
    %v169 = vpop.f32.mrb[0].mxu0
    %v170 = vadd.f32 %v53, %v169
    %171 = vmatprep.mubr.f32.mxu0 0.0
    %172 = vmatmul.mubr.f32.gmra.mrb[0].mxu0 %v87
    %v173 = vpop.f32.mrb[0].mxu0
    %v174 = vadd.f32 %v49, %v173
    %v175 = vpop.f32.mrb[0].mxu0
    %v176 = vadd.f32 %v53, %v175
    %177 = vdwg.mxu0
    %178 = vmatprep.subr.mxu0 %v35
    %179 = vmatpush1.msra.mxu0 %v34
    %180 = vmatprep.subr.mxu0 %v41
    %181 = vmatpush1.msra.mxu0 %v40
    %182 = vmatprep.subr.mxu0 0.0
    %183 = vmatpush1.msra.mxu0 0.0
    %184 = vmatprep.subr.mxu0 0.0
    %185 = vmatpush1.msra.mxu0 0.0
    %186 = vmatprep.subr.mxu0 0.0
    %187 = vmatpush1.msra.mxu0 0.0
    %188 = vmatprep.subr.mxu0 0.0
    %189 = vmatpush1.msra.mxu0 0.0
    %190 = vmatprep.subr.mxu0 0.0
    %191 = vmatpush1.msra.mxu0 0.0
    %192 = vmatprep.subr.mxu0 0.0
    %193 = vmatpush1.msra.mxu0 0.0
    %194 = vmatprep.subr.mxu0 0.0
    %195 = vmatpush1.msra.mxu0 0.0
    %196 = vmatprep.subr.mxu0 0.0
    %197 = vmatpush1.msra.mxu0 0.0
    %198 = vmatprep.subr.mxu0 0.0
    %199 = vmatpush1.msra.mxu0 0.0
    %200 = vmatprep.subr.mxu0 0.0
    %201 = vmatpush1.msra.mxu0 0.0
    %202 = vmatprep.subr.mxu0 0.0
    %203 = vmatpush1.msra.mxu0 0.0
    %204 = vmatprep.subr.mxu0 0.0
    %205 = vmatpush1.msra.mxu0 0.0
    %206 = vmatprep.subr.mxu0 0.0
    %207 = vmatpush1.msra.mxu0 0.0
    %208 = vmatprep.subr.mxu0 0.0
    %209 = vmatpush1.msra.mxu0 0.0
    %210 = vmatprep.subr.mxu0 0.0
    %211 = vmatpush1.msra.mxu0 0.0
    %212 = vmatprep.subr.mxu0 0.0
    %213 = vmatpush1.msra.mxu0 0.0
    %214 = vmatprep.subr.mxu0 0.0
    %215 = vmatpush1.msra.mxu0 0.0
    %216 = vmatprep.subr.mxu0 0.0
    %217 = vmatpush1.msra.mxu0 0.0
    %218 = vmatprep.subr.mxu0 0.0
    %219 = vmatpush1.msra.mxu0 0.0
    %220 = vmatprep.subr.mxu0 0.0
    %221 = vmatpush1.msra.mxu0 0.0
    %222 = vmatprep.subr.mxu0 0.0
    %223 = vmatpush1.msra.mxu0 0.0
    %224 = vmatprep.subr.mxu0 0.0
    %225 = vmatpush1.msra.mxu0 0.0
    %226 = vmatprep.subr.mxu0 0.0
    %227 = vmatpush1.msra.mxu0 0.0
    %228 = vmatprep.subr.mxu0 0.0
    %229 = vmatpush1.msra.mxu0 0.0
    %230 = vmatprep.subr.mxu0 0.0
    %231 = vmatpush1.msra.mxu0 0.0
    %232 = vmatprep.subr.mxu0 0.0
    %233 = vmatpush1.msra.mxu0 0.0
    %234 = vmatprep.subr.mxu0 0.0
    %235 = vmatpush1.msra.mxu0 0.0
    %236 = vmatprep.subr.mxu0 0.0
    %237 = vmatpush1.msra.mxu0 0.0
    %238 = vmatprep.subr.mxu0 0.0
    %239 = vmatpush1.msra.mxu0 0.0
    %240 = vmatprep.subr.mxu0 0.0
    %241 = vmatpush1.msra.mxu0 0.0
    %242 = vmatprep.mubr.f32.mxu0 0.0
    %243 = vmatmul.mubr.f32.gmra.mrb[0].mxu0 %v78
    %v244 = vpop.f32.mrb[0].mxu0
    %v245 = vadd.f32 %v57, %v244
    %v246 = vpop.f32.mrb[0].mxu0
    %v247 = vadd.f32 %v61, %v246
    %248 = vmatprep.mubr.f32.mxu0 0.0
    %249 = vmatmul.mubr.f32.gmra.mrb[0].mxu0 %v81
    %v250 = vpop.f32.mrb[0].mxu0
    %v251 = vadd.f32 %v57, %v250
    %v252 = vpop.f32.mrb[0].mxu0
    %v253 = vadd.f32 %v61, %v252
    %254 = vmatprep.mubr.f32.mxu0 0.0
    %255 = vmatmul.mubr.f32.gmra.mrb[0].mxu0 %v84
    %v256 = vpop.f32.mrb[0].mxu0
    %v257 = vadd.f32 %v57, %v256
    %v258 = vpop.f32.mrb[0].mxu0
    %v259 = vadd.f32 %v61, %v258
    %260 = vmatprep.mubr.f32.mxu0 0.0
    %261 = vmatmul.mubr.f32.gmra.mrb[0].mxu0 %v87
    %v262 = vpop.f32.mrb[0].mxu0
    %v263 = vadd.f32 %v57, %v262
    %v264 = vpop.f32.mrb[0].mxu0
    %v265 = vadd.f32 %v61, %v264
    %266 = vdwg.mxu0
    %267 = vmatprep.subr.mxu0 %v37
    %268 = vmatpush1.msra.mxu0 %v36
    %269 = vmatprep.subr.mxu0 %v43
    %270 = vmatpush1.msra.mxu0 %v42
    %271 = vmatprep.subr.mxu0 0.0
    %272 = vmatpush1.msra.mxu0 0.0
    %273 = vmatprep.subr.mxu0 0.0
    %274 = vmatpush1.msra.mxu0 0.0
    %275 = vmatprep.subr.mxu0 0.0
    %276 = vmatpush1.msra.mxu0 0.0
    %277 = vmatprep.subr.mxu0 0.0
    %278 = vmatpush1.msra.mxu0 0.0
    %279 = vmatprep.subr.mxu0 0.0
    %280 = vmatpush1.msra.mxu0 0.0
    %281 = vmatprep.subr.mxu0 0.0
    %282 = vmatpush1.msra.mxu0 0.0
    %283 = vmatprep.subr.mxu0 0.0
    %284 = vmatpush1.msra.mxu0 0.0
    %285 = vmatprep.subr.mxu0 0.0
    %286 = vmatpush1.msra.mxu0 0.0
    %287 = vmatprep.subr.mxu0 0.0
    %288 = vmatpush1.msra.mxu0 0.0
    %289 = vmatprep.subr.mxu0 0.0
    %290 = vmatpush1.msra.mxu0 0.0
    %291 = vmatprep.subr.mxu0 0.0
    %292 = vmatpush1.msra.mxu0 0.0
    %293 = vmatprep.subr.mxu0 0.0
    %294 = vmatpush1.msra.mxu0 0.0
    %295 = vmatprep.subr.mxu0 0.0
    %296 = vmatpush1.msra.mxu0 0.0
    %297 = vmatprep.subr.mxu0 0.0
    %298 = vmatpush1.msra.mxu0 0.0
    %299 = vmatprep.subr.mxu0 0.0
    %300 = vmatpush1.msra.mxu0 0.0
    %301 = vmatprep.subr.mxu0 0.0
    %302 = vmatpush1.msra.mxu0 0.0
    %303 = vmatprep.subr.mxu0 0.0
    %304 = vmatpush1.msra.mxu0 0.0
    %305 = vmatprep.subr.mxu0 0.0
    %306 = vmatpush1.msra.mxu0 0.0
    %307 = vmatprep.subr.mxu0 0.0
    %308 = vmatpush1.msra.mxu0 0.0
    %309 = vmatprep.subr.mxu0 0.0
    %310 = vmatpush1.msra.mxu0 0.0
    %311 = vmatprep.subr.mxu0 0.0
    %312 = vmatpush1.msra.mxu0 0.0
    %313 = vmatprep.subr.mxu0 0.0
    %314 = vmatpush1.msra.mxu0 0.0
    %315 = vmatprep.subr.mxu0 0.0
    %316 = vmatpush1.msra.mxu0 0.0
    %317 = vmatprep.subr.mxu0 0.0
    %318 = vmatpush1.msra.mxu0 0.0
    %319 = vmatprep.subr.mxu0 0.0
    %320 = vmatpush1.msra.mxu0 0.0
    %321 = vmatprep.subr.mxu0 0.0
    %322 = vmatpush1.msra.mxu0 0.0
    %323 = vmatprep.subr.mxu0 0.0
    %324 = vmatpush1.msra.mxu0 0.0
    %325 = vmatprep.subr.mxu0 0.0
    %326 = vmatpush1.msra.mxu0 0.0
    %327 = vmatprep.subr.mxu0 0.0
    %328 = vmatpush1.msra.mxu0 0.0
    %329 = vmatprep.subr.mxu0 0.0
    %330 = vmatpush1.msra.mxu0 0.0
    %331 = vmatprep.mubr.f32.mxu0 0.0
    %332 = vmatmul.mubr.f32.gmra.mrb[0].mxu0 %v78
    %v333 = vpop.f32.mrb[0].mxu0
    %v334 = vadd.f32 %v65, %v333
    %v335 = vpop.f32.mrb[0].mxu0
    %v336 = vadd.f32 %v69, %v335
    %337 = vmatprep.mubr.f32.mxu0 0.0
    %338 = vmatmul.mubr.f32.gmra.mrb[0].mxu0 %v81
    %v339 = vpop.f32.mrb[0].mxu0
    %v340 = vadd.f32 %v65, %v339
    %v341 = vpop.f32.mrb[0].mxu0
    %v342 = vadd.f32 %v69, %v341
    %343 = vmatprep.mubr.f32.mxu0 0.0
    %344 = vmatmul.mubr.f32.gmra.mrb[0].mxu0 %v84
    %v345 = vpop.f32.mrb[0].mxu0
    %v346 = vadd.f32 %v65, %v345
    %v347 = vpop.f32.mrb[0].mxu0
    %v348 = vadd.f32 %v69, %v347
    %349 = vmatprep.mubr.f32.mxu0 0.0
    %350 = vmatmul.mubr.f32.gmra.mrb[0].mxu0 %v87
    %v351 = vpop.f32.mrb[0].mxu0
    %v352 = vadd.f32 %v65, %v351
    %v353 = vpop.f32.mrb[0].mxu0
    %v354 = vadd.f32 %v69, %v353
    %355 = vdwg.mxu0
    %356 = vst [vmem:[%s3] sm:$0xff] %v156
    %357 = vst [vmem:[%s3 + $0x8] sm:$0xff] %v158
    %358 = vst [vmem:[%s3 + $0x10] sm:$0xff] %v245
    %359 = vst [vmem:[%s3 + $0x18] sm:$0xff] %v247
    %360 = vst [vmem:[%s3 + $0x20] sm:$0xff] %v334
    %361 = vst [vmem:[%s3 + $0x28] sm:$0xff] %v336
    %362 = vst [vmem:[%s3 + $0x30] sm:$0xff] %v162
    %363 = vst [vmem:[%s3 + $0x38] sm:$0xff] %v164
    %364 = vst [vmem:[%s3 + $0x40] sm:$0xff] %v251
    %365 = vst [vmem:[%s3 + $0x48] sm:$0xff] %v253
    %366 = vst [vmem:[%s3 + $0x50] sm:$0xff] %v340
    %367 = vst [vmem:[%s3 + $0x58] sm:$0xff] %v342
    %368 = vst [vmem:[%s3 + $0x60] sm:$0xff] %v168
    %369 = vst [vmem:[%s3 + $0x68] sm:$0xff] %v170
    %370 = vst [vmem:[%s3 + $0x70] sm:$0xff] %v257
    %371 = vst [vmem:[%s3 + $0x78] sm:$0xff] %v259
    %372 = vst [vmem:[%s3 + $0x80] sm:$0xff] %v346
    %373 = vst [vmem:[%s3 + $0x88] sm:$0xff] %v348
    %374 = vst [vmem:[%s3 + $0x90] sm:$0xf] %v174
    %375 = vst [vmem:[%s3 + $0x98] sm:$0xf] %v176
    %376 = vst [vmem:[%s3 + $0xa0] sm:$0xf] %v263
    %377 = vst [vmem:[%s3 + $0xa8] sm:$0xf] %v265
    %378 = vst [vmem:[%s3 + $0xb0] sm:$0xf] %v352
    %379 = vst [vmem:[%s3 + $0xb8] sm:$0xf] %v354
    // Predicated region
    $region18: #{patch_embed_1d.1} parent=1 // pred_check
      _
    $region19: #{patch_embed_1d.1} parent=1 // pred_check_branch
      %381 = sbr.rel (0) target = $region21
    $region20: #{patch_embed_1d.1} parent=1 // pred_region
      _
    $region21: #{patch_embed_1d.1} parent=1 // pred_fallthru
      _
    // Predicated region
    $region22: #{patch_embed_1d.1} parent=1 // pred_check
      _
    $region23: #{patch_embed_1d.1} parent=1 // pred_check_branch
      %383 = sbr.rel (0) target = $region25
    $region24: #{patch_embed_1d.1} parent=1 // pred_region
      _
    $region25: #{patch_embed_1d.1} parent=1 // pred_fallthru
      _
    %384 = vsyncpa [#allocation3], 1

</llo_original>
